<compile_context>
chip_gen: v5e
topology: v5e:2x2
jax: 0.10.0
libtpu: 0.0.40
codegen_flags: <defaults>
</compile_context>

<pallas_src>
import functools

import jax
import jax.numpy as jnp
from jax.experimental import pallas as pl
from jax.experimental.pallas import tpu as pltpu

_INV_SQRT2 = 0.7071067811865476
_SQRT_2_OVER_PI = 0.7978845608028654


def _gelu(x, approximate):
    if approximate:
        # tanh form: the transcendental lands on the EUP slot (free next to MXU work).
        return 0.5 * x * (1.0 + jnp.tanh(_SQRT_2_OVER_PI * (x + 0.044715 * x * x * x)))
    # exact erf form == PyTorch nn.GELU() default (VPU polynomial, slower).
    return 0.5 * x * (1.0 + jax.lax.erf(x * _INV_SQRT2))


def _mlp_kernel_resident(x_ref, w1_ref, b1_ref, w2_ref, b2_ref, o_ref,
                         *, approximate_gelu):
    # Grid: (M//tm,).  Full W1/b1/W2/b2 are VMEM-resident (constant index maps ->
    # DMA'd once for the whole kernel); each step finishes one (tm, D) row tile.
    h = jnp.dot(x_ref[...], w1_ref[...], preferred_element_type=jnp.float32)
    h = _gelu(h + b1_ref[...].astype(jnp.float32), approximate_gelu)
    y = jnp.dot(h.astype(w2_ref.dtype), w2_ref[...],
                preferred_element_type=jnp.float32)
    o_ref[...] = (y + b2_ref[...].astype(jnp.float32)).astype(o_ref.dtype)


def _mlp_kernel_tiled(x_ref, w1_ref, b1_ref, w2_ref, b2_ref, o_ref, acc_ref,
                      *, approximate_gelu):
    # Grid: (M//tm, Hp//th).  H is the reduction axis ("arbitrary"): the (tm, D)
    # output block is resident across it and accumulated in f32 VMEM scratch.
    h_idx = pl.program_id(1)

    @pl.when(h_idx == 0)
    def _():
        acc_ref[...] = jnp.zeros_like(acc_ref)

    h = jnp.dot(x_ref[...], w1_ref[...], preferred_element_type=jnp.float32)
    h = _gelu(h + b1_ref[...].astype(jnp.float32), approximate_gelu)
    # Cast the (tm, th) intermediate to the weight dtype (bf16 weights -> bf16 MXU
    # rate, halves the live intermediate); keep the f32 accumulator in scratch.
    acc_ref[...] += jnp.dot(h.astype(w2_ref.dtype), w2_ref[...],
                            preferred_element_type=jnp.float32)

    @pl.when(h_idx == pl.num_programs(1) - 1)
    def _():
        o_ref[...] = (acc_ref[...] + b2_ref[...].astype(jnp.float32)).astype(o_ref.dtype)


def _round_up(x, m):
    return (x + m - 1) // m * m


def _vmem_budget_bytes():
    try:
        cap = int(pltpu.get_tpu_info().vmem_capacity_bytes)
    except Exception:
        cap = 64 << 20                      # conservative: v7x per-TensorCore VMEM
    cap = min(max(cap, 32 << 20), 128 << 20)
    return (cap * 3) // 4                   # 25% headroom for compiler scratch/semaphores


def _pick_hidden_tile(H, tile_h):
    """(th, Hp): prefer a lane-aligned divisor of H so no per-call weight padding."""
    if H <= max(tile_h, 128):
        return H, H
    cap = max(128, (tile_h // 128) * 128)
    th = (min(cap, H) // 128) * 128
    while th >= 128:
        if H % th == 0:
            return th, H
        th -= 128
    # No 128-aligned divisor: pad the hidden dim (GELU(0)=0 and zero W2 rows are exact).
    th = cap
    return th, _round_up(H, th)


@functools.partial(
    jax.jit,
    static_argnames=("tile_m", "tile_h", "approximate_gelu", "compute_dtype",
                     "force_hidden_tiling"),
)
def mlp_block(x, w1, b1, w2, b2, *, tile_m=512, tile_h=512,
              approximate_gelu=True, compute_dtype=None,
              force_hidden_tiling=False):
    """x: (B, N, D) -> (B, N, D).  Weights follow the y = x @ W + b convention."""
    B, N, D = x.shape
    H = w1.shape[1]
    M = B * N
    out_dtype = x.dtype

    # Optional low-precision MXU feeds (f32 accumulation kept in-kernel).
    if compute_dtype is not None:
        cdt = jnp.dtype(compute_dtype)
        x, w1, w2 = x.astype(cdt), w1.astype(cdt), w2.astype(cdt)

    xb = x.dtype.itemsize
    wb = w1.dtype.itemsize
    ob = jnp.dtype(out_dtype).itemsize
    cast_b = wb if wb < 4 else 0   # low-precision copy of GELU output feeding matmul #2

    budget = _vmem_budget_bytes()

    # ---- static M-tile selection --------------------------------------------
    sub = max(8, 32 // xb)         # packed-sublane rows: 8 f32, 16 bf16, 32 int8/fp8
    m_full = _round_up(max(M, sub), sub)
    tm = min(_round_up(tile_m, sub), m_full)
    if tm >= m_full and m_full >= 2 * sub:
        # Keep >= 2 M-tiles so the "parallel" axis can shard across v7x's 2 TCs.
        tm = max(sub, _round_up(-(-M // 2), sub))

    # VMEM footprints (double-buffered tiles counted conservatively; includes the
    # (tm, th/H) f32 GELU intermediate and its cast copy, plus matmul-2 results).
    def f_res(t):
        return (2 * t * D * xb + 2 * t * D * ob
                + 2 * (D * H + H + H * D + D) * wb
                + t * H * (4 + cast_b) + t * D * 4)

    def f_tiled(t, th):
        return (2 * t * D * xb + 2 * t * D * ob
                + 2 * (D * th + th + th * D + D) * wb
                + t * th * (4 + cast_b) + 2 * t * D * 4)

    def shrink(t, fits):
        while t > sub and not fits(t):
            t = max(sub, _round_up(t // 2, sub))
        return t

    tm_res = shrink(tm, lambda t: f_res(t) <= budget)
    use_resident = (not force_hidden_tiling
                    and f_res(tm_res) <= budget
                    and (tm_res == tm or tm_res >= 256))

    if use_resident:
        # ---------------- resident-weight fast path (no H grid axis) ----------
        tm = tm_res
        Mp = _round_up(M, tm)
        x2d = x.reshape(M, D)
        if Mp != M:
            x2d = jnp.pad(x2d, ((0, Mp - M), (0, 0)))

        footprint = f_res(tm)
        vmem_limit = int(min(budget, max(footprint + max(footprint // 4, 2 << 20),
                                         16 << 20)))
        kernel = functools.partial(_mlp_kernel_resident,
                                   approximate_gelu=approximate_gelu)
        out2d = pl.pallas_call(
            kernel,
            out_shape=jax.ShapeDtypeStruct((Mp, D), out_dtype),
            grid_spec=pltpu.PrefetchScalarGridSpec(
                num_scalar_prefetch=0,
                grid=(Mp // tm,),
                in_specs=[
                    pl.BlockSpec((tm, D), lambda i: (i, 0)),   # x row tile
                    pl.BlockSpec((D, H), lambda i: (0, 0)),    # W1 (resident)
                    pl.BlockSpec((1, H), lambda i: (0, 0)),    # b1 (resident)
                    pl.BlockSpec((H, D), lambda i: (0, 0)),    # W2 (resident)
                    pl.BlockSpec((1, D), lambda i: (0, 0)),    # b2 (resident)
                ],
                out_specs=pl.BlockSpec((tm, D), lambda i: (i, 0)),
            ),
            compiler_params=pltpu.CompilerParams(
                dimension_semantics=("parallel",),
                vmem_limit_bytes=vmem_limit,
            ),
        )(x2d, w1, b1, w2, b2)
        return out2d[:M].reshape(B, N, D)

    # ---------------- H-tiled path (weights streamed per hidden slice) --------
    th, Hp = _pick_hidden_tile(H, tile_h)
    tm = shrink(tm, lambda t: f_tiled(t, th) <= budget)
    if f_tiled(tm, th) > budget and th > 128:
        th = 128
        Hp = H if H % th == 0 else _round_up(H, th)
        tm = shrink(tm, lambda t: f_tiled(t, th) <= budget)

    Mp = _round_up(M, tm)
    x2d = x.reshape(M, D)
    if Mp != M:
        x2d = jnp.pad(x2d, ((0, Mp - M), (0, 0)))
    if Hp != H:
        # GELU(0 + 0) == 0 and the padded W2 rows are zero -> padding is exact.
        w1 = jnp.pad(w1, ((0, 0), (0, Hp - H)))
        b1 = jnp.pad(b1, ((0, 0), (0, Hp - H)))
        w2 = jnp.pad(w2, ((0, Hp - H), (0, 0)))

    footprint = f_tiled(tm, th)
    vmem_limit = int(min(budget, max(footprint + max(footprint // 4, 2 << 20),
                                     16 << 20)))
    kernel = functools.partial(_mlp_kernel_tiled, approximate_gelu=approximate_gelu)

    out2d = pl.pallas_call(
        kernel,
        out_shape=jax.ShapeDtypeStruct((Mp, D), out_dtype),
        grid_spec=pltpu.PrefetchScalarGridSpec(
            num_scalar_prefetch=0,
            grid=(Mp // tm, Hp // th),
            in_specs=[
                pl.BlockSpec((tm, D), lambda i, h: (i, 0)),   # x tile (constant in h)
                pl.BlockSpec((D, th), lambda i, h: (0, h)),   # W1 hidden slice
                pl.BlockSpec((1, th), lambda i, h: (0, h)),   # b1 hidden slice
                pl.BlockSpec((th, D), lambda i, h: (h, 0)),   # W2 hidden slice
                pl.BlockSpec((1, D), lambda i, h: (0, 0)),    # b2
            ],
            out_specs=pl.BlockSpec((tm, D), lambda i, h: (i, 0)),
            scratch_shapes=[pltpu.VMEM((tm, D), jnp.float32)],
        ),
        compiler_params=pltpu.CompilerParams(
            dimension_semantics=("parallel", "arbitrary"),
            vmem_limit_bytes=vmem_limit,
        ),
    )(x2d, w1, b1, w2, b2)
    return out2d[:M].reshape(B, N, D)


def reference_mlp(x, w1, b1, w2, b2, approximate=False):
    h = jnp.einsum("bnd,dh->bnh", x, w1) + b1[0]
    h = jax.nn.gelu(h, approximate=approximate)
    return jnp.einsum("bnh,hd->bnd", h, w2) + b2[0]


if __name__ == "__main__":
    # Small shapes consistent with the module: embed_dim=128, mlp_ratio=4 -> hidden=512.
    B, N, D = 2, 8, 128
    H = int(D * 4.0)

    key = jax.random.PRNGKey(0)
    kx, kw1, kb1, kw2, kb2 = jax.random.split(key, 5)

    x = jax.random.normal(kx, (B, N, D), dtype=jnp.float32)
    # Deterministic parameter init (Kaiming-uniform-ish scale, like nn.Linear defaults).
    w1 = jax.random.uniform(kw1, (D, H), jnp.float32, -1.0, 1.0) / jnp.sqrt(D)
    b1 = jax.random.uniform(kb1, (1, H), jnp.float32, -1.0, 1.0) / jnp.sqrt(D)
    w2 = jax.random.uniform(kw2, (H, D), jnp.float32, -1.0, 1.0) / jnp.sqrt(H)
    b2 = jax.random.uniform(kb2, (1, D), jnp.float32, -1.0, 1.0) / jnp.sqrt(H)

    # 1) Resident-weight fast path, exact erf GELU (PyTorch nn.GELU() semantics).
    out = jax.block_until_ready(mlp_block(x, w1, b1, w2, b2, approximate_gelu=False))
    ref = reference_mlp(x, w1, b1, w2, b2, approximate=False)
    assert out.shape == (B, N, D)
    assert jnp.allclose(out, ref, atol=1e-5, rtol=1e-5), "resident/exact mismatch"

    # 2) H-tiled accumulation path (forced), ragged M, default tanh GELU.
    xr = x[:, :7]
    out_t = jax.block_until_ready(
        mlp_block(xr, w1, b1, w2, b2, tile_h=256, force_hidden_tiling=True))
    ref_t = reference_mlp(xr, w1, b1, w2, b2, approximate=True)
    assert out_t.shape == (B, 7, D)
    assert jnp.allclose(out_t, ref_t, atol=1e-5, rtol=1e-5), "tiled/tanh mismatch"

    # 3) bf16 MXU-feed option (f32 accumulation) — loose tolerance vs f32 reference.
    out_bf = jax.block_until_ready(
        mlp_block(x, w1, b1, w2, b2, compute_dtype=jnp.bfloat16))
    ref_a = reference_mlp(x, w1, b1, w2, b2, approximate=True)
    assert jnp.allclose(out_bf, ref_a, atol=5e-2, rtol=5e-2), "bf16 path mismatch"

    print("KERNEL_OK")
</pallas_src>

<mosaic_0001>
module attributes {stable_mosaic.version = 11 : i64} {
  func.func @_mlp_kernel_resident(%arg0: i32, %arg1: memref<8x128xf32, #tpu.memory_space<vmem>>, %arg2: memref<128x512xf32, #tpu.memory_space<vmem>>, %arg3: memref<1x512xf32, #tpu.memory_space<vmem>>, %arg4: memref<512x128xf32, #tpu.memory_space<vmem>>, %arg5: memref<1x128xf32, #tpu.memory_space<vmem>>, %arg6: memref<8x128xf32, #tpu.memory_space<vmem>>) attributes {dimension_semantics = [#tpu.dimension_semantics<parallel>], iteration_bounds = array<i64: 2>, scalar_prefetch = 0 : i64, scratch_operands = 0 : i64, tpu.core_type = #tpu.core_type<tc>, window_params = [{transform_indices = @transform_0, window_bounds = array<i64: 8, 128>}, {pipeline_mode = #tpu.pipeline_mode<synchronous>, transform_indices = @transform_1, window_bounds = array<i64: 128, 512>}, {pipeline_mode = #tpu.pipeline_mode<synchronous>, transform_indices = @transform_2, window_bounds = array<i64: 1, 512>}, {pipeline_mode = #tpu.pipeline_mode<synchronous>, transform_indices = @transform_3, window_bounds = array<i64: 512, 128>}, {pipeline_mode = #tpu.pipeline_mode<synchronous>, transform_indices = @transform_4, window_bounds = array<i64: 1, 128>}, {transform_indices = @transform_5, window_bounds = array<i64: 8, 128>}]} {
    %c0 = arith.constant 0 : index
    %c0_0 = arith.constant 0 : index
    %0 = vector.load %arg1[%c0, %c0_0] : memref<8x128xf32, #tpu.memory_space<vmem>>, vector<8x128xf32>
    %c0_1 = arith.constant 0 : index
    %c0_2 = arith.constant 0 : index
    %1 = vector.load %arg2[%c0_1, %c0_2] : memref<128x512xf32, #tpu.memory_space<vmem>>, vector<128x512xf32>
    %cst = arith.constant dense<0.000000e+00> : vector<8x512xf32>
    %2 = tpu.matmul %0, %1, %cst {dimension_numbers = #tpu.dot_dimension_numbers<[1], [0], [0], [1], [0, 0, 1, 1], [], []>} : vector<8x128xf32>, vector<128x512xf32>, vector<8x512xf32> -> vector<8x512xf32>
    %c0_3 = arith.constant 0 : index
    %c0_4 = arith.constant 0 : index
    %3 = vector.load %arg3[%c0_3, %c0_4] : memref<1x512xf32, #tpu.memory_space<vmem>>, vector<1x512xf32>
    %4 = vector.broadcast %3 : vector<1x512xf32> to vector<8x512xf32>
    %5 = arith.addf %2, %4 : vector<8x512xf32>
    %cst_5 = arith.constant 5.000000e-01 : f32
    %6 = vector.broadcast %cst_5 : f32 to vector<8x512xf32>
    %7 = arith.mulf %6, %5 : vector<8x512xf32>
    %cst_6 = arith.constant 0.707106769 : f32
    %8 = vector.broadcast %cst_6 : f32 to vector<8x512xf32>
    %9 = arith.mulf %5, %8 : vector<8x512xf32>
    %10 = math.erf %9 : vector<8x512xf32>
    %cst_7 = arith.constant 1.000000e+00 : f32
    %11 = vector.broadcast %cst_7 : f32 to vector<8x512xf32>
    %12 = arith.addf %11, %10 : vector<8x512xf32>
    %13 = arith.mulf %7, %12 : vector<8x512xf32>
    %c0_8 = arith.constant 0 : index
    %c0_9 = arith.constant 0 : index
    %14 = vector.load %arg4[%c0_8, %c0_9] : memref<512x128xf32, #tpu.memory_space<vmem>>, vector<512x128xf32>
    %cst_10 = arith.constant dense<0.000000e+00> : vector<8x128xf32>
    %15 = tpu.matmul %13, %14, %cst_10 {dimension_numbers = #tpu.dot_dimension_numbers<[1], [0], [0], [1], [0, 0, 1, 1], [], []>} : vector<8x512xf32>, vector<512x128xf32>, vector<8x128xf32> -> vector<8x128xf32>
    %c0_11 = arith.constant 0 : index
    %c0_12 = arith.constant 0 : index
    %16 = vector.load %arg5[%c0_11, %c0_12] : memref<1x128xf32, #tpu.memory_space<vmem>>, vector<1x128xf32>
    %17 = vector.broadcast %16 : vector<1x128xf32> to vector<8x128xf32>
    %18 = arith.addf %15, %17 : vector<8x128xf32>
    %c0_13 = arith.constant 0 : index
    %c0_14 = arith.constant 0 : index
    %19 = vector.load %arg6[%c0_13, %c0_14] : memref<8x128xf32, #tpu.memory_space<vmem>>, vector<8x128xf32>
    tpu.vector_store %arg6[%c0_13, %c0_14], %18 {strides = array<i32>} : memref<8x128xf32, #tpu.memory_space<vmem>>, vector<8x128xf32>,
    return
  }
  func.func @transform_0(%arg0: i32) -> (i32, i32) {
    %c0_i32 = arith.constant 0 : i32
    %c0_i32_0 = arith.constant 0 : i32
    return %arg0, %c0_i32 : i32, i32
  }
  func.func @transform_1(%arg0: i32) -> (i32, i32) {
    %c0_i32 = arith.constant 0 : i32
    %c0_i32_0 = arith.constant 0 : i32
    %c0_i32_1 = arith.constant 0 : i32
    return %c0_i32, %c0_i32_0 : i32, i32
  }
  func.func @transform_2(%arg0: i32) -> (i32, i32) {
    %c0_i32 = arith.constant 0 : i32
    %c0_i32_0 = arith.constant 0 : i32
    %c0_i32_1 = arith.constant 0 : i32
    return %c0_i32, %c0_i32_0 : i32, i32
  }
  func.func @transform_3(%arg0: i32) -> (i32, i32) {
    %c0_i32 = arith.constant 0 : i32
    %c0_i32_0 = arith.constant 0 : i32
    %c0_i32_1 = arith.constant 0 : i32
    return %c0_i32, %c0_i32_0 : i32, i32
  }
  func.func @transform_4(%arg0: i32) -> (i32, i32) {
    %c0_i32 = arith.constant 0 : i32
    %c0_i32_0 = arith.constant 0 : i32
    %c0_i32_1 = arith.constant 0 : i32
    return %c0_i32, %c0_i32_0 : i32, i32
  }
  func.func @transform_5(%arg0: i32) -> (i32, i32) {
    %c0_i32 = arith.constant 0 : i32
    %c0_i32_0 = arith.constant 0 : i32
    return %arg0, %c0_i32 : i32, i32
  }
}

</mosaic_0001>

<llo_original>
// kernel: mlp_block.1
$region0: #{mlp_block.1}
  #allocation0 [shape = 'u32[]', space=smem, size = 0x4, offset = 0x4, fixed_abs, tag = 'smem constant byte address 0x4 - core index']
  #allocation1 [shape = 'u32[72,128]{1,0:T(1,128)}', space=vmem, size = 0x9000, scoped, tag = 'internal scratch']
  %s0 = inlined_call_operand.hbm [shape: f32[16,128], index: 0, kind: input, shape index: {}]
  %s1 = inlined_call_operand.hbm [shape: f32[128,512], index: 1, kind: input, shape index: {}]
  %s2 = inlined_call_operand.hbm [shape: f32[1,512], index: 2, kind: input, shape index: {}]
  %s3 = inlined_call_operand.hbm [shape: f32[512,128], index: 3, kind: input, shape index: {}]
  %s4 = inlined_call_operand.vmem [shape: f32[1,128], index: 4, kind: input, shape index: {}]
  %s5 = inlined_call_operand.hbm [shape: f32[16,128], index: 5, kind: output, shape index: {}]
  %s6 = sld [smem:[#allocation0]]
  $region69: #{mlp_block.1} parent=0
    _
  %s8 = ssub.s32 1, %s6
  %s9 = scalar_select 0, %s8, %s6
  $region1: #{mlp_block.1} parent=0
    #allocation2 [shape = 'u8[8192]{0}', space=vmem, size = 0x2000, scoped, tag = 'input window, operand 0']
    #allocation3 [shape = 's32[2]{0}', space=sflag, size = 0x8, scoped, tag = 'scoped memory for mlp_block.1']
    #allocation4 [shape = 's32[2]{0}', space=sflag, size = 0x8, scoped, tag = 'scoped memory for mlp_block.1']
    #allocation5 [shape = 'u8[262144]{0}', space=vmem, size = 0x40000, scoped, tag = 'input window, operand 1, single buffered']
    #allocation6 [shape = 's32[1]{0}', space=sflag, size = 0x4, scoped, tag = 'scoped memory for mlp_block.1']
    #allocation7 [shape = 'u8[2048]{0}', space=vmem, size = 0x800, scoped, tag = 'input window, operand 2, single buffered']
    #allocation8 [shape = 'u8[262144]{0}', space=vmem, size = 0x40000, scoped, tag = 'input window, operand 3, single buffered']
    #allocation9 [shape = 's32[1]{0}', space=sflag, size = 0x4, scoped, tag = 'scoped memory for mlp_block.1']
    #allocation10 [shape = 'u8[8192]{0}', space=vmem, size = 0x2000, scoped, tag = 'output window, operand 0']
    %10 = vsyncpa [#allocation3], 0
    %s11 = scalar_lea.sflag [#allocation3], 1
    %12 = vsyncpa %s11, 0
    %13 = vsyncpa [#allocation6], 0
    %14 = vsyncpa [#allocation9], 0
    %15 = vsyncpa [#allocation4], 0
    %s16 = scalar_lea.sflag [#allocation4], 1
    %17 = vsyncpa %s16, 0
    loop: start=0, step=1, limit=4
    $region2: #{mlp_block.1} parent=1 // loop_pre_header
      _
    $region3: #{mlp_block.1} parent=1 // loop_header
      %s19 = sphi 0, %s23
      %p20 = scmp.ge.s32.totalorder %s19, 4
      %s29 = sphi 0, %s31
      %s32 = sphi 0, %s29
      %s33 = sphi 0, %s32
      %s49 = sphi 0, %s33
      %s53 = sphi 0, %s53
      %s55 = sphi 0, %s53
      %s56 = sphi 0, %s55
      %s70 = sphi 0, %s56
      %s74 = sphi 0, %s74
      %s76 = sphi 0, %s74
      %s77 = sphi 0, %s76
      %s91 = sphi 0, %s77
      %s95 = sphi 0, %s95
      %s97 = sphi 0, %s95
      %s98 = sphi 0, %s97
      %s112 = sphi 0, %s98
      %s116 = sphi 0, %s116
      %s118 = sphi 0, %s116
      %s119 = sphi 0, %s118
      %s133 = sphi 0, %s119
      %s139 = sphi 0, %s141
      %s142 = sphi 0, %s139
      %s143 = sphi 0, %s142
      %s159 = sphi 0, %s143
    $region4: #{mlp_block.1} parent=1 // loop_header_branch
      %22 = sbr.rel (%p20) target = $region8
    $region5: #{mlp_block.1} parent=1 // loop_body
      %s24 = ssub.s32 %s19, 1
      %s25 = ssub.s32 %s19, 2
      %s26 = sadd.s32 %s19, 1
      %s27 = ssub.s32 %s19, %s26
      %p28 = scmp.eq.s32.totalorder %s27, 0
      %s30 = sadd.s32 %s29, 1
      %s31 = scalar_select %p28, %s29, %s30
      %p34 = pneg %p28
      %p35 = scmp.eq.s32.totalorder %s19, 1
      %p36 = por %p34, %p35
      %p37 = scmp.ne.s32.totalorder %s29, %s32
      %p38 = scmp.eq.s32.totalorder %s19, 0
      %p39 = por %p37, %p38
      %p40 = scmp.ne.s32.totalorder %s29, %s32
      %p41 = scmp.eq.s32.totalorder %s24, 1
      %p42 = por %p40, %p41
      %p43 = scmp.ne.s32.totalorder %s32, %s33
      %p44 = scmp.eq.s32.totalorder %s24, 0
      %p45 = por %p43, %p44
      %p46 = scmp.ne.s32.totalorder %s32, %s33
      %p47 = scmp.eq.s32.totalorder %s25, 1
      %p48 = por %p46, %p47
      %p50 = scmp.ne.s32.totalorder %s33, %s49
      %p51 = scmp.eq.s32.totalorder %s25, 0
      %p52 = por %p50, %p51
      %s54 = sadd.s32 %s53, 1
      %p57 = scmp.eq.s32.totalorder %s19, 1
      %p58 = scmp.ne.s32.totalorder %s53, %s55
      %p59 = scmp.eq.s32.totalorder %s19, 0
      %p60 = por %p58, %p59
      %p61 = scmp.ne.s32.totalorder %s53, %s55
      %p62 = scmp.eq.s32.totalorder %s24, 1
      %p63 = por %p61, %p62
      %p64 = scmp.ne.s32.totalorder %s55, %s56
      %p65 = scmp.eq.s32.totalorder %s24, 0
      %p66 = por %p64, %p65
      %p67 = scmp.ne.s32.totalorder %s55, %s56
      %p68 = scmp.eq.s32.totalorder %s25, 1
      %p69 = por %p67, %p68
      %p71 = scmp.ne.s32.totalorder %s56, %s70
      %p72 = scmp.eq.s32.totalorder %s25, 0
      %p73 = por %p71, %p72
      %s75 = sadd.s32 %s74, 1
      %p78 = scmp.eq.s32.totalorder %s19, 1
      %p79 = scmp.ne.s32.totalorder %s74, %s76
      %p80 = scmp.eq.s32.totalorder %s19, 0
      %p81 = por %p79, %p80
      %p82 = scmp.ne.s32.totalorder %s74, %s76
      %p83 = scmp.eq.s32.totalorder %s24, 1
      %p84 = por %p82, %p83
      %p85 = scmp.ne.s32.totalorder %s76, %s77
      %p86 = scmp.eq.s32.totalorder %s24, 0
      %p87 = por %p85, %p86
      %p88 = scmp.ne.s32.totalorder %s76, %s77
      %p89 = scmp.eq.s32.totalorder %s25, 1
      %p90 = por %p88, %p89
      %p92 = scmp.ne.s32.totalorder %s77, %s91
      %p93 = scmp.eq.s32.totalorder %s25, 0
      %p94 = por %p92, %p93
      %s96 = sadd.s32 %s95, 1
      %p99 = scmp.eq.s32.totalorder %s19, 1
      %p100 = scmp.ne.s32.totalorder %s95, %s97
      %p101 = scmp.eq.s32.totalorder %s19, 0
      %p102 = por %p100, %p101
      %p103 = scmp.ne.s32.totalorder %s95, %s97
      %p104 = scmp.eq.s32.totalorder %s24, 1
      %p105 = por %p103, %p104
      %p106 = scmp.ne.s32.totalorder %s97, %s98
      %p107 = scmp.eq.s32.totalorder %s24, 0
      %p108 = por %p106, %p107
      %p109 = scmp.ne.s32.totalorder %s97, %s98
      %p110 = scmp.eq.s32.totalorder %s25, 1
      %p111 = por %p109, %p110
      %p113 = scmp.ne.s32.totalorder %s98, %s112
      %p114 = scmp.eq.s32.totalorder %s25, 0
      %p115 = por %p113, %p114
      %s117 = sadd.s32 %s116, 1
      %p120 = scmp.eq.s32.totalorder %s19, 1
      %p121 = scmp.ne.s32.totalorder %s116, %s118
      %p122 = scmp.eq.s32.totalorder %s19, 0
      %p123 = por %p121, %p122
      %p124 = scmp.ne.s32.totalorder %s116, %s118
      %p125 = scmp.eq.s32.totalorder %s24, 1
      %p126 = por %p124, %p125
      %p127 = scmp.ne.s32.totalorder %s118, %s119
      %p128 = scmp.eq.s32.totalorder %s24, 0
      %p129 = por %p127, %p128
      %p130 = scmp.ne.s32.totalorder %s118, %s119
      %p131 = scmp.eq.s32.totalorder %s25, 1
      %p132 = por %p130, %p131
      %p134 = scmp.ne.s32.totalorder %s119, %s133
      %p135 = scmp.eq.s32.totalorder %s25, 0
      %p136 = por %p134, %p135
      %s137 = ssub.s32 %s19, %s26
      %p138 = scmp.eq.s32.totalorder %s137, 0
      %s140 = sadd.s32 %s139, 1
      %s141 = scalar_select %p138, %s139, %s140
      %p144 = pneg %p138
      %p145 = scmp.eq.s32.totalorder %s19, 1
      %p146 = por %p144, %p145
      %p147 = scmp.ne.s32.totalorder %s139, %s142
      %p148 = scmp.eq.s32.totalorder %s19, 0
      %p149 = por %p147, %p148
      %p150 = scmp.ne.s32.totalorder %s139, %s142
      %p151 = scmp.eq.s32.totalorder %s24, 1
      %p152 = por %p150, %p151
      %p153 = scmp.ne.s32.totalorder %s142, %s143
      %p154 = scmp.eq.s32.totalorder %s24, 0
      %p155 = por %p153, %p154
      %p156 = scmp.ne.s32.totalorder %s142, %s143
      %p157 = scmp.eq.s32.totalorder %s25, 1
      %p158 = por %p156, %p157
      %p160 = scmp.ne.s32.totalorder %s143, %s159
      %p161 = scmp.eq.s32.totalorder %s25, 0
      %p162 = por %p160, %p161
      %p163 = scmp.le.s32.totalorder 1, %s19
      %p164 = scmp.lt.s32.totalorder %s19, 3
      %p165 = pnand %p163, %p164
      %p166 = pneg %p165
      // Predicated region
      $region9: #{mlp_block.1} parent=5 // pred_check
        _
      $region10: #{mlp_block.1} parent=5 // pred_check_branch
        %168 = sbr.rel (%p165) target = $region12
      $region11: #{mlp_block.1} parent=5 // pred_region
        %s169 = ssub.s32 %s19, 1
        // Predicated region
        $region13: #{mlp_block.1} parent=11 // pred_check
          %p170 = pneg %p66
        $region14: #{mlp_block.1} parent=11 // pred_check_branch
          %172 = sbr.rel (%p170) target = $region16
        $region15: #{mlp_block.1} parent=11 // pred_region
          %174 = vsyncadd [#allocation6], 0
          %s175 = sshll.u32 %s1, 4
          %s176 = int_to_ptr.hbm [resolvable:$true] %s175
          %s177 = sshll.u32 [#allocation5], 4
          %s178 = int_to_ptr.vmem [resolvable:$true] %s177
          %183 = dma.hbm_to_vmem [thread:$0]  %s176, 8192, %s178, [#allocation6], 512, 512, 32
        $region16: #{mlp_block.1} parent=11 // pred_fallthru
          _
        // Predicated region
        $region17: #{mlp_block.1} parent=11 // pred_check
          %p184 = pneg %p87
        $region18: #{mlp_block.1} parent=11 // pred_check_branch
          %186 = sbr.rel (%p184) target = $region20
        $region19: #{mlp_block.1} parent=11 // pred_region
          %188 = vsyncadd [#allocation6], 0
          %s190 = sshll.u32 %s2, 4
          %s191 = int_to_ptr.hbm [resolvable:$true] %s190
          %s192 = sshll.u32 [#allocation7], 4
          %s193 = int_to_ptr.vmem [resolvable:$true] %s192
          %195 = dma.hbm_to_vmem [thread:$0]  %s191, 64, %s193, [#allocation6]
        $region20: #{mlp_block.1} parent=11 // pred_fallthru
          _
        // Predicated region
        $region21: #{mlp_block.1} parent=11 // pred_check
          %p196 = pneg %p108
        $region22: #{mlp_block.1} parent=11 // pred_check_branch
          %198 = sbr.rel (%p196) target = $region24
        $region23: #{mlp_block.1} parent=11 // pred_region
          %200 = vsyncadd [#allocation9], 0
          %s201 = sshll.u32 %s3, 4
          %s202 = int_to_ptr.hbm [resolvable:$true] %s201
          %s203 = sshll.u32 [#allocation8], 4
          %s204 = int_to_ptr.vmem [resolvable:$true] %s203
          %209 = dma.hbm_to_vmem [thread:$0]  %s202, 8192, %s204, [#allocation9], 128, 128, 8
        $region24: #{mlp_block.1} parent=11 // pred_fallthru
          _
        // Predicated region
        $region25: #{mlp_block.1} parent=11 // pred_check
          %p210 = pneg %p129
        $region26: #{mlp_block.1} parent=11 // pred_check_branch
          %212 = sbr.rel (%p210) target = $region28
        $region27: #{mlp_block.1} parent=11 // pred_region
          _
        $region28: #{mlp_block.1} parent=11 // pred_fallthru
          _
      $region12: #{mlp_block.1} parent=5 // pred_fallthru
        _
      %p213 = scmp.lt.s32.totalorder %s19, 2
      // Predicated region
      $region29: #{mlp_block.1} parent=5 // pred_check
        %p214 = pneg %p213
      $region30: #{mlp_block.1} parent=5 // pred_check_branch
        %216 = sbr.rel (%p214) target = $region32
      $region31: #{mlp_block.1} parent=5 // pred_region
        // Predicated region
        $region33: #{mlp_block.1} parent=31 // pred_check
          %p217 = pneg %p39
        $region34: #{mlp_block.1} parent=31 // pred_check_branch
          %219 = sbr.rel (%p217) target = $region36
        $region35: #{mlp_block.1} parent=31 // pred_region
          %s220 = sand.u32 %s29, 1
          %s221 = scalar_lea.sflag [#allocation3], %s220
          %s222 = sand.u32 %s29, 1
          %s223 = smul.addr %s222, 8
          %s224 = scalar_lea.vmem [#allocation2], %s223
          %226 = vsyncadd %s221, 0
          %s227 = smul.addr %s19, 8
          %s228 = scalar_lea.hbm %s0, %s227
          %s230 = sshll.u32 %s228, 4
          %s231 = int_to_ptr.hbm [resolvable:$true] %s230
          %s232 = sshll.u32 %s224, 4
          %s233 = int_to_ptr.vmem [resolvable:$true] %s232
          %235 = dma.hbm_to_vmem [thread:$0]  %s231, 128, %s233, %s221
        $region36: #{mlp_block.1} parent=31 // pred_fallthru
          _
      $region32: #{mlp_block.1} parent=5 // pred_fallthru
        _
      %p236 = scmp.le.s32.totalorder 1, %s19
      %p237 = scmp.lt.s32.totalorder %s19, 3
      %p238 = pnand %p236, %p237
      %p239 = pneg %p238
      // Predicated region
      $region37: #{mlp_block.1} parent=5 // pred_check
        _
      $region38: #{mlp_block.1} parent=5 // pred_check_branch
        %241 = sbr.rel (%p238) target = $region40
      $region39: #{mlp_block.1} parent=5 // pred_region
        %s242 = ssub.s32 %s19, 1
        %s243 = sand.u32 %s32, 1
        %s244 = scalar_lea.sflag [#allocation3], %s243
        %s245 = sand.u32 %s32, 1
        %s246 = smul.addr %s245, 8
        %s247 = scalar_lea.vmem [#allocation2], %s246
        // Predicated region
        $region41: #{mlp_block.1} parent=39 // pred_check
          %p248 = pneg %p45
        $region42: #{mlp_block.1} parent=39 // pred_check_branch
          %250 = sbr.rel (%p248) target = $region44
        $region43: #{mlp_block.1} parent=39 // pred_region
          %252 = dma.done %s244, 128
        $region44: #{mlp_block.1} parent=39 // pred_fallthru
          _
        // Predicated region
        $region45: #{mlp_block.1} parent=39 // pred_check
          %p253 = pneg %p66
        $region46: #{mlp_block.1} parent=39 // pred_check_branch
          %255 = sbr.rel (%p253) target = $region48
        $region47: #{mlp_block.1} parent=39 // pred_region
          %257 = dma.done [#allocation6], 8192
        $region48: #{mlp_block.1} parent=39 // pred_fallthru
          _
        // Predicated region
        $region49: #{mlp_block.1} parent=39 // pred_check
          %p258 = pneg %p87
        $region50: #{mlp_block.1} parent=39 // pred_check_branch
          %260 = sbr.rel (%p258) target = $region52
        $region51: #{mlp_block.1} parent=39 // pred_region
          %262 = dma.done [#allocation6], 64
        $region52: #{mlp_block.1} parent=39 // pred_fallthru
          _
        // Predicated region
        $region53: #{mlp_block.1} parent=39 // pred_check
          %p263 = pneg %p108
        $region54: #{mlp_block.1} parent=39 // pred_check_branch
          %265 = sbr.rel (%p263) target = $region56
        $region55: #{mlp_block.1} parent=39 // pred_region
          %267 = dma.done [#allocation9], 8192
        $region56: #{mlp_block.1} parent=39 // pred_fallthru
          _
        %s268 = sand.u32 %s32, 1
        %s269 = scalar_lea.sflag [#allocation3], %s268
        %s270 = sand.u32 %s32, 1
        %s271 = smul.addr %s270, 8
        %s272 = scalar_lea.vmem [#allocation2], %s271
        %p273 = pneg %p45
        %p274 = pneg %p42
        %p275 = pneg %p66
        %p276 = pneg %p63
        %p277 = pneg %p87
        %p278 = pneg %p84
        %p279 = pneg %p108
        %p280 = pneg %p105
        %p281 = pneg %p129
        %p282 = pneg %p126
        %p283 = pneg %p155
        %p284 = pneg %p152
        %s285 = sand.u32 %s142, 1
        %s286 = scalar_lea.sflag [#allocation4], %s285
        %s287 = sand.u32 %s142, 1
        %s288 = smul.addr %s287, 8
        %s289 = scalar_lea.vmem [#allocation10], %s288
        %v290 = vld [vmem:[%s247] sm:$0xff]
        %v291 = vld [vmem:[#allocation5] sm:$0xff]
        %v292 = vld [vmem:[#allocation5 + $0x8] sm:$0xff]
        %v293 = vld [vmem:[#allocation5 + $0x10] sm:$0xff]
        %v294 = vld [vmem:[#allocation5 + $0x18] sm:$0xff]
        %v295 = vld [vmem:[#allocation5 + $0x20] sm:$0xff]
        %v296 = vld [vmem:[#allocation5 + $0x28] sm:$0xff]
        %v297 = vld [vmem:[#allocation5 + $0x30] sm:$0xff]
        %v298 = vld [vmem:[#allocation5 + $0x38] sm:$0xff]
        %v299 = vld [vmem:[#allocation5 + $0x40] sm:$0xff]
        %v300 = vld [vmem:[#allocation5 + $0x48] sm:$0xff]
        %v301 = vld [vmem:[#allocation5 + $0x50] sm:$0xff]
        %v302 = vld [vmem:[#allocation5 + $0x58] sm:$0xff]
        %v303 = vld [vmem:[#allocation5 + $0x60] sm:$0xff]
        %v304 = vld [vmem:[#allocation5 + $0x68] sm:$0xff]
        %v305 = vld [vmem:[#allocation5 + $0x70] sm:$0xff]
        %v306 = vld [vmem:[#allocation5 + $0x78] sm:$0xff]
        %v307 = vld [vmem:[#allocation5 + $0x80] sm:$0xff]
        %v308 = vld [vmem:[#allocation5 + $0x88] sm:$0xff]
        %v309 = vld [vmem:[#allocation5 + $0x90] sm:$0xff]
        %v310 = vld [vmem:[#allocation5 + $0x98] sm:$0xff]
        %v311 = vld [vmem:[#allocation5 + $0xa0] sm:$0xff]
        %v312 = vld [vmem:[#allocation5 + $0xa8] sm:$0xff]
        %v313 = vld [vmem:[#allocation5 + $0xb0] sm:$0xff]
        %v314 = vld [vmem:[#allocation5 + $0xb8] sm:$0xff]
        %v315 = vld [vmem:[#allocation5 + $0xc0] sm:$0xff]
        %v316 = vld [vmem:[#allocation5 + $0xc8] sm:$0xff]
        %v317 = vld [vmem:[#allocation5 + $0xd0] sm:$0xff]
        %v318 = vld [vmem:[#allocation5 + $0xd8] sm:$0xff]
        %v319 = vld [vmem:[#allocation5 + $0xe0] sm:$0xff]
        %v320 = vld [vmem:[#allocation5 + $0xe8] sm:$0xff]
        %v321 = vld [vmem:[#allocation5 + $0xf0] sm:$0xff]
        %v322 = vld [vmem:[#allocation5 + $0xf8] sm:$0xff]
        %v323 = vld [vmem:[#allocation5 + $0x100] sm:$0xff]
        %v324 = vld [vmem:[#allocation5 + $0x108] sm:$0xff]
        %v325 = vld [vmem:[#allocation5 + $0x110] sm:$0xff]
        %v326 = vld [vmem:[#allocation5 + $0x118] sm:$0xff]
        %v327 = vld [vmem:[#allocation5 + $0x120] sm:$0xff]
        %v328 = vld [vmem:[#allocation5 + $0x128] sm:$0xff]
        %v329 = vld [vmem:[#allocation5 + $0x130] sm:$0xff]
        %v330 = vld [vmem:[#allocation5 + $0x138] sm:$0xff]
        %v331 = vld [vmem:[#allocation5 + $0x140] sm:$0xff]
        %v332 = vld [vmem:[#allocation5 + $0x148] sm:$0xff]
        %v333 = vld [vmem:[#allocation5 + $0x150] sm:$0xff]
        %v334 = vld [vmem:[#allocation5 + $0x158] sm:$0xff]
        %v335 = vld [vmem:[#allocation5 + $0x160] sm:$0xff]
        %v336 = vld [vmem:[#allocation5 + $0x168] sm:$0xff]
        %v337 = vld [vmem:[#allocation5 + $0x170] sm:$0xff]
        %v338 = vld [vmem:[#allocation5 + $0x178] sm:$0xff]
        %v339 = vld [vmem:[#allocation5 + $0x180] sm:$0xff]
        %v340 = vld [vmem:[#allocation5 + $0x188] sm:$0xff]
        %v341 = vld [vmem:[#allocation5 + $0x190] sm:$0xff]
        %v342 = vld [vmem:[#allocation5 + $0x198] sm:$0xff]
        %v343 = vld [vmem:[#allocation5 + $0x1a0] sm:$0xff]
        %v344 = vld [vmem:[#allocation5 + $0x1a8] sm:$0xff]
        %v345 = vld [vmem:[#allocation5 + $0x1b0] sm:$0xff]
        %v346 = vld [vmem:[#allocation5 + $0x1b8] sm:$0xff]
        %v347 = vld [vmem:[#allocation5 + $0x1c0] sm:$0xff]
        %v348 = vld [vmem:[#allocation5 + $0x1c8] sm:$0xff]
        %v349 = vld [vmem:[#allocation5 + $0x1d0] sm:$0xff]
        %v350 = vld [vmem:[#allocation5 + $0x1d8] sm:$0xff]
        %v351 = vld [vmem:[#allocation5 + $0x1e0] sm:$0xff]
        %v352 = vld [vmem:[#allocation5 + $0x1e8] sm:$0xff]
        %v353 = vld [vmem:[#allocation5 + $0x1f0] sm:$0xff]
        %v354 = vld [vmem:[#allocation5 + $0x1f8] sm:$0xff]
        %v355 = vld [vmem:[#allocation7] sm:$0xf]
        %v357 = vperm.slane %v355, 0
        %v358 = vperm.slane %v355, 1
        %v359 = vperm.slane %v355, 2
        %v360 = vperm.slane %v355, 3
        %365 = vmatpush.msra.mxu0 %v351
        %366 = vmatpush.msra.mxu0 %v347
        %367 = vmatpush.msra.mxu0 %v343
        %368 = vmatpush.msra.mxu0 %v339
        %369 = vmatpush.msra.mxu0 %v335
        %370 = vmatpush.msra.mxu0 %v331
        %371 = vmatpush.msra.mxu0 %v327
        %372 = vmatpush.msra.mxu0 %v323
        %373 = vmatpush.msra.mxu0 %v319
        %374 = vmatpush.msra.mxu0 %v315
        %375 = vmatpush.msra.mxu0 %v311
        %376 = vmatpush.msra.mxu0 %v307
        %377 = vmatpush.msra.mxu0 %v303
        %378 = vmatpush.msra.mxu0 %v299
        %379 = vmatpush.msra.mxu0 %v295
        %380 = vmatpush.msra.mxu0 %v291
        %381 = vmatmul.f32.gmra.mxu0 %v290
        %v382 = vpop.f32.mrf.mxu0
        %v383 = vadd.f32 %v357, %v382
        %384 = vdwg.mxu0
        %385 = vmatpush.msra.mxu0 %v352
        %386 = vmatpush.msra.mxu0 %v348
        %387 = vmatpush.msra.mxu0 %v344
        %388 = vmatpush.msra.mxu0 %v340
        %389 = vmatpush.msra.mxu0 %v336
        %390 = vmatpush.msra.mxu0 %v332
        %391 = vmatpush.msra.mxu0 %v328
        %392 = vmatpush.msra.mxu0 %v324
        %393 = vmatpush.msra.mxu0 %v320
        %394 = vmatpush.msra.mxu0 %v316
        %395 = vmatpush.msra.mxu0 %v312
        %396 = vmatpush.msra.mxu0 %v308
        %397 = vmatpush.msra.mxu0 %v304
        %398 = vmatpush.msra.mxu0 %v300
        %399 = vmatpush.msra.mxu0 %v296
        %400 = vmatpush.msra.mxu0 %v292
        %401 = vmatmul.f32.gmra.mxu0 %v290
        %v402 = vpop.f32.mrf.mxu0
        %v403 = vadd.f32 %v358, %v402
        %404 = vdwg.mxu0
        %405 = vmatpush.msra.mxu0 %v353
        %406 = vmatpush.msra.mxu0 %v349
        %407 = vmatpush.msra.mxu0 %v345
        %408 = vmatpush.msra.mxu0 %v341
        %409 = vmatpush.msra.mxu0 %v337
        %410 = vmatpush.msra.mxu0 %v333
        %411 = vmatpush.msra.mxu0 %v329
        %412 = vmatpush.msra.mxu0 %v325
        %413 = vmatpush.msra.mxu0 %v321
        %414 = vmatpush.msra.mxu0 %v317
        %415 = vmatpush.msra.mxu0 %v313
        %416 = vmatpush.msra.mxu0 %v309
        %417 = vmatpush.msra.mxu0 %v305
        %418 = vmatpush.msra.mxu0 %v301
        %419 = vmatpush.msra.mxu0 %v297
        %420 = vmatpush.msra.mxu0 %v293
        %421 = vmatmul.f32.gmra.mxu0 %v290
        %v422 = vpop.f32.mrf.mxu0
        %v423 = vadd.f32 %v359, %v422
        %424 = vdwg.mxu0
        %425 = vmatpush.msra.mxu0 %v354
        %426 = vmatpush.msra.mxu0 %v350
        %427 = vmatpush.msra.mxu0 %v346
        %428 = vmatpush.msra.mxu0 %v342
        %429 = vmatpush.msra.mxu0 %v338
        %430 = vmatpush.msra.mxu0 %v334
        %431 = vmatpush.msra.mxu0 %v330
        %432 = vmatpush.msra.mxu0 %v326
        %433 = vmatpush.msra.mxu0 %v322
        %434 = vmatpush.msra.mxu0 %v318
        %435 = vmatpush.msra.mxu0 %v314
        %436 = vmatpush.msra.mxu0 %v310
        %437 = vmatpush.msra.mxu0 %v306
        %438 = vmatpush.msra.mxu0 %v302
        %439 = vmatpush.msra.mxu0 %v298
        %440 = vmatpush.msra.mxu0 %v294
        %441 = vmatmul.f32.gmra.mxu0 %v290
        %v442 = vpop.f32.mrf.mxu0
        %v443 = vadd.f32 %v360, %v442
        %444 = vdwg.mxu0
        %v445 = vmul.f32 %v383, 0.5
        %v446 = vmul.f32 %v403, 0.5
        %v447 = vmul.f32 %v423, 0.5
        %v448 = vmul.f32 %v443, 0.5
        %v449 = vmul.f32 %v383, 0.70710677
        %v450 = vmul.f32 %v403, 0.70710677
        %v451 = vmul.f32 %v423, 0.70710677
        %v452 = vmul.f32 %v443, 0.70710677
        %v453 = vmul.f32 %v449, %v449
        %v454 = vmin.f32 16.0, %v453
        %v455 = vmul.f32 %v454, 2.1237322e-06
        %v456 = vadd.f32 %v455, 0.00028619796
        %v457 = vmul.f32 %v454, %v456
        %v458 = vadd.f32 %v457, 0.0036580483
        %v459 = vmul.f32 %v454, %v458
        %v460 = vadd.f32 %v459, 0.05243302
        %v461 = vmul.f32 %v454, %v460
        %v462 = vadd.f32 %v461, 0.18741608
        %v463 = vmul.f32 %v454, %v462
        %v464 = vadd.f32 %v463, 1.1283791
        %v465 = vmul.f32 %v449, %v464
        %v466 = vmul.f32 %v454, 3.8918573e-05
        %v467 = vadd.f32 %v466, 0.001143296
        %v468 = vmul.f32 %v454, %v467
        %v469 = vadd.f32 %v468, 0.014752088
        %v470 = vmul.f32 %v454, %v469
        %v471 = vadd.f32 %v470, 0.112945676
        %v472 = vmul.f32 %v454, %v471
        %v473 = vadd.f32 %v472, 0.4994258
        %v474 = vmul.f32 %v454, %v473
        %v475 = vadd.f32 %v474, 1.0
        %v476 = vrcp.pop %v475
        %v477 = vmul.f32 %v475, %v476
        %v478 = vsub.f32 1.0, %v477
        %v479 = vmul.f32 %v476, %v478
        %v480 = vadd.f32 %v476, %v479
        %vm481 = vweird.f32 %v475
        %vm482 = vweird.f32 %v476
        %vm483 = vmor %vm481, %vm482
        %v484 = vsel %vm483, %v476, %v480
        %v485 = vand.u32 2147483647, %v475
        %vm486 = vcmp.eq.f32.partialorder %v485, 8.507059e+37
        %v487 = vand.u32 %v475, 2147483648
        %v488 = vor.u32 1.1754944e-38, %v487
        %v489 = vsel %vm486, %v488, %v484
        %v490 = vmul.f32 %v465, %v489
        %v491 = vmin.f32 %v490, 1.0
        %v492 = vmax.f32 %v491, -1.0
        %v493 = vmul.f32 %v450, %v450
        %v494 = vmin.f32 16.0, %v493
        %v495 = vmul.f32 %v494, 2.1237322e-06
        %v496 = vadd.f32 %v495, 0.00028619796
        %v497 = vmul.f32 %v494, %v496
        %v498 = vadd.f32 %v497, 0.0036580483
        %v499 = vmul.f32 %v494, %v498
        %v500 = vadd.f32 %v499, 0.05243302
        %v501 = vmul.f32 %v494, %v500
        %v502 = vadd.f32 %v501, 0.18741608
        %v503 = vmul.f32 %v494, %v502
        %v504 = vadd.f32 %v503, 1.1283791
        %v505 = vmul.f32 %v450, %v504
        %v506 = vmul.f32 %v494, 3.8918573e-05
        %v507 = vadd.f32 %v506, 0.001143296
        %v508 = vmul.f32 %v494, %v507
        %v509 = vadd.f32 %v508, 0.014752088
        %v510 = vmul.f32 %v494, %v509
        %v511 = vadd.f32 %v510, 0.112945676
        %v512 = vmul.f32 %v494, %v511
        %v513 = vadd.f32 %v512, 0.4994258
        %v514 = vmul.f32 %v494, %v513
        %v515 = vadd.f32 %v514, 1.0
        %v516 = vrcp.pop %v515
        %v517 = vmul.f32 %v515, %v516
        %v518 = vsub.f32 1.0, %v517
        %v519 = vmul.f32 %v516, %v518
        %v520 = vadd.f32 %v516, %v519
        %vm521 = vweird.f32 %v515
        %vm522 = vweird.f32 %v516
        %vm523 = vmor %vm521, %vm522
        %v524 = vsel %vm523, %v516, %v520
        %v525 = vand.u32 2147483647, %v515
        %vm526 = vcmp.eq.f32.partialorder %v525, 8.507059e+37
        %v527 = vand.u32 %v515, 2147483648
        %v528 = vor.u32 1.1754944e-38, %v527
        %v529 = vsel %vm526, %v528, %v524
        %v530 = vmul.f32 %v505, %v529
        %v531 = vmin.f32 %v530, 1.0
        %v532 = vmax.f32 %v531, -1.0
        %v533 = vmul.f32 %v451, %v451
        %v534 = vmin.f32 16.0, %v533
        %v535 = vmul.f32 %v534, 2.1237322e-06
        %v536 = vadd.f32 %v535, 0.00028619796
        %v537 = vmul.f32 %v534, %v536
        %v538 = vadd.f32 %v537, 0.0036580483
        %v539 = vmul.f32 %v534, %v538
        %v540 = vadd.f32 %v539, 0.05243302
        %v541 = vmul.f32 %v534, %v540
        %v542 = vadd.f32 %v541, 0.18741608
        %v543 = vmul.f32 %v534, %v542
        %v544 = vadd.f32 %v543, 1.1283791
        %v545 = vmul.f32 %v451, %v544
        %v546 = vmul.f32 %v534, 3.8918573e-05
        %v547 = vadd.f32 %v546, 0.001143296
        %v548 = vmul.f32 %v534, %v547
        %v549 = vadd.f32 %v548, 0.014752088
        %v550 = vmul.f32 %v534, %v549
        %v551 = vadd.f32 %v550, 0.112945676
        %v552 = vmul.f32 %v534, %v551
        %v553 = vadd.f32 %v552, 0.4994258
        %v554 = vmul.f32 %v534, %v553
        %v555 = vadd.f32 %v554, 1.0
        %v556 = vrcp.pop %v555
        %v557 = vmul.f32 %v555, %v556
        %v558 = vsub.f32 1.0, %v557
        %v559 = vmul.f32 %v556, %v558
        %v560 = vadd.f32 %v556, %v559
        %vm561 = vweird.f32 %v555
        %vm562 = vweird.f32 %v556
        %vm563 = vmor %vm561, %vm562
        %v564 = vsel %vm563, %v556, %v560
        %v565 = vand.u32 2147483647, %v555
        %vm566 = vcmp.eq.f32.partialorder %v565, 8.507059e+37
        %v567 = vand.u32 %v555, 2147483648
        %v568 = vor.u32 1.1754944e-38, %v567
        %v569 = vsel %vm566, %v568, %v564
        %v570 = vmul.f32 %v545, %v569
        %v571 = vmin.f32 %v570, 1.0
        %v572 = vmax.f32 %v571, -1.0
        %v573 = vmul.f32 %v452, %v452
        %v574 = vmin.f32 16.0, %v573
        %v575 = vmul.f32 %v574, 2.1237322e-06
        %v576 = vadd.f32 %v575, 0.00028619796
        %v577 = vmul.f32 %v574, %v576
        %v578 = vadd.f32 %v577, 0.0036580483
        %v579 = vmul.f32 %v574, %v578
        %v580 = vadd.f32 %v579, 0.05243302
        %v581 = vmul.f32 %v574, %v580
        %v582 = vadd.f32 %v581, 0.18741608
        %v583 = vmul.f32 %v574, %v582
        %v584 = vadd.f32 %v583, 1.1283791
        %v585 = vmul.f32 %v452, %v584
        %v586 = vmul.f32 %v574, 3.8918573e-05
        %v587 = vadd.f32 %v586, 0.001143296
        %v588 = vmul.f32 %v574, %v587
        %v589 = vadd.f32 %v588, 0.014752088
        %v590 = vmul.f32 %v574, %v589
        %v591 = vadd.f32 %v590, 0.112945676
        %v592 = vmul.f32 %v574, %v591
        %v593 = vadd.f32 %v592, 0.4994258
        %v594 = vmul.f32 %v574, %v593
        %v595 = vadd.f32 %v594, 1.0
        %v596 = vrcp.pop %v595
        %v597 = vmul.f32 %v595, %v596
        %v598 = vsub.f32 1.0, %v597
        %v599 = vmul.f32 %v596, %v598
        %v600 = vadd.f32 %v596, %v599
        %vm601 = vweird.f32 %v595
        %vm602 = vweird.f32 %v596
        %vm603 = vmor %vm601, %vm602
        %v604 = vsel %vm603, %v596, %v600
        %v605 = vand.u32 2147483647, %v595
        %vm606 = vcmp.eq.f32.partialorder %v605, 8.507059e+37
        %v607 = vand.u32 %v595, 2147483648
        %v608 = vor.u32 1.1754944e-38, %v607
        %v609 = vsel %vm606, %v608, %v604
        %v610 = vmul.f32 %v585, %v609
        %v611 = vmin.f32 %v610, 1.0
        %v612 = vmax.f32 %v611, -1.0
        %v613 = vadd.f32 %v492, 1.0
        %v614 = vadd.f32 %v532, 1.0
        %v615 = vadd.f32 %v572, 1.0
        %v616 = vadd.f32 %v612, 1.0
        %v617 = vmul.f32 %v445, %v613
        %v618 = vmul.f32 %v446, %v614
        %v619 = vmul.f32 %v447, %v615
        %v620 = vmul.f32 %v448, %v616
        %v621 = vld [vmem:[#allocation8] sm:$0xff]
        %v622 = vld [vmem:[#allocation8 + $0x8] sm:$0xff]
        %v623 = vld [vmem:[#allocation8 + $0x10] sm:$0xff]
        %v624 = vld [vmem:[#allocation8 + $0x18] sm:$0xff]
        %v625 = vld [vmem:[#allocation8 + $0x20] sm:$0xff]
        %v626 = vld [vmem:[#allocation8 + $0x28] sm:$0xff]
        %v627 = vld [vmem:[#allocation8 + $0x30] sm:$0xff]
        %v628 = vld [vmem:[#allocation8 + $0x38] sm:$0xff]
        %v629 = vld [vmem:[#allocation8 + $0x40] sm:$0xff]
        %v630 = vld [vmem:[#allocation8 + $0x48] sm:$0xff]
        %v631 = vld [vmem:[#allocation8 + $0x50] sm:$0xff]
        %v632 = vld [vmem:[#allocation8 + $0x58] sm:$0xff]
        %v633 = vld [vmem:[#allocation8 + $0x60] sm:$0xff]
        %v634 = vld [vmem:[#allocation8 + $0x68] sm:$0xff]
        %v635 = vld [vmem:[#allocation8 + $0x70] sm:$0xff]
        %v636 = vld [vmem:[#allocation8 + $0x78] sm:$0xff]
        %v637 = vld [vmem:[#allocation8 + $0x80] sm:$0xff]
        %v638 = vld [vmem:[#allocation8 + $0x88] sm:$0xff]
        %v639 = vld [vmem:[#allocation8 + $0x90] sm:$0xff]
        %v640 = vld [vmem:[#allocation8 + $0x98] sm:$0xff]
        %v641 = vld [vmem:[#allocation8 + $0xa0] sm:$0xff]
        %v642 = vld [vmem:[#allocation8 + $0xa8] sm:$0xff]
        %v643 = vld [vmem:[#allocation8 + $0xb0] sm:$0xff]
        %v644 = vld [vmem:[#allocation8 + $0xb8] sm:$0xff]
        %v645 = vld [vmem:[#allocation8 + $0xc0] sm:$0xff]
        %v646 = vld [vmem:[#allocation8 + $0xc8] sm:$0xff]
        %v647 = vld [vmem:[#allocation8 + $0xd0] sm:$0xff]
        %v648 = vld [vmem:[#allocation8 + $0xd8] sm:$0xff]
        %v649 = vld [vmem:[#allocation8 + $0xe0] sm:$0xff]
        %v650 = vld [vmem:[#allocation8 + $0xe8] sm:$0xff]
        %v651 = vld [vmem:[#allocation8 + $0xf0] sm:$0xff]
        %v652 = vld [vmem:[#allocation8 + $0xf8] sm:$0xff]
        %v653 = vld [vmem:[#allocation8 + $0x100] sm:$0xff]
        %v654 = vld [vmem:[#allocation8 + $0x108] sm:$0xff]
        %v655 = vld [vmem:[#allocation8 + $0x110] sm:$0xff]
        %v656 = vld [vmem:[#allocation8 + $0x118] sm:$0xff]
        %v657 = vld [vmem:[#allocation8 + $0x120] sm:$0xff]
        %v658 = vld [vmem:[#allocation8 + $0x128] sm:$0xff]
        %v659 = vld [vmem:[#allocation8 + $0x130] sm:$0xff]
        %v660 = vld [vmem:[#allocation8 + $0x138] sm:$0xff]
        %v661 = vld [vmem:[#allocation8 + $0x140] sm:$0xff]
        %v662 = vld [vmem:[#allocation8 + $0x148] sm:$0xff]
        %v663 = vld [vmem:[#allocation8 + $0x150] sm:$0xff]
        %v664 = vld [vmem:[#allocation8 + $0x158] sm:$0xff]
        %v665 = vld [vmem:[#allocation8 + $0x160] sm:$0xff]
        %v666 = vld [vmem:[#allocation8 + $0x168] sm:$0xff]
        %v667 = vld [vmem:[#allocation8 + $0x170] sm:$0xff]
        %v668 = vld [vmem:[#allocation8 + $0x178] sm:$0xff]
        %v669 = vld [vmem:[#allocation8 + $0x180] sm:$0xff]
        %v670 = vld [vmem:[#allocation8 + $0x188] sm:$0xff]
        %v671 = vld [vmem:[#allocation8 + $0x190] sm:$0xff]
        %v672 = vld [vmem:[#allocation8 + $0x198] sm:$0xff]
        %v673 = vld [vmem:[#allocation8 + $0x1a0] sm:$0xff]
        %v674 = vld [vmem:[#allocation8 + $0x1a8] sm:$0xff]
        %v675 = vld [vmem:[#allocation8 + $0x1b0] sm:$0xff]
        %v676 = vld [vmem:[#allocation8 + $0x1b8] sm:$0xff]
        %v677 = vld [vmem:[#allocation8 + $0x1c0] sm:$0xff]
        %v678 = vld [vmem:[#allocation8 + $0x1c8] sm:$0xff]
        %v679 = vld [vmem:[#allocation8 + $0x1d0] sm:$0xff]
        %v680 = vld [vmem:[#allocation8 + $0x1d8] sm:$0xff]
        %v681 = vld [vmem:[#allocation8 + $0x1e0] sm:$0xff]
        %v682 = vld [vmem:[#allocation8 + $0x1e8] sm:$0xff]
        %v683 = vld [vmem:[#allocation8 + $0x1f0] sm:$0xff]
        %v684 = vld [vmem:[#allocation8 + $0x1f8] sm:$0xff]
        %v685 = vld [vmem:[%s4] sm:$0x1]
        %v687 = vperm.slane %v685, 0
        %689 = vmatpush.msra.mxu0 %v636
        %690 = vmatpush.msra.mxu0 %v635
        %691 = vmatpush.msra.mxu0 %v634
        %692 = vmatpush.msra.mxu0 %v633
        %693 = vmatpush.msra.mxu0 %v632
        %694 = vmatpush.msra.mxu0 %v631
        %695 = vmatpush.msra.mxu0 %v630
        %696 = vmatpush.msra.mxu0 %v629
        %697 = vmatpush.msra.mxu0 %v628
        %698 = vmatpush.msra.mxu0 %v627
        %699 = vmatpush.msra.mxu0 %v626
        %700 = vmatpush.msra.mxu0 %v625
        %701 = vmatpush.msra.mxu0 %v624
        %702 = vmatpush.msra.mxu0 %v623
        %703 = vmatpush.msra.mxu0 %v622
        %704 = vmatpush.msra.mxu0 %v621
        %705 = vmatmul.f32.gmra.mxu0 %v617
        %v706 = vpop.f32.mrf.mxu0
        %v707 = vadd.f32 %v687, %v706
        %708 = vdwg.mxu0
        %709 = vmatpush.msra.mxu0 %v652
        %710 = vmatpush.msra.mxu0 %v651
        %711 = vmatpush.msra.mxu0 %v650
        %712 = vmatpush.msra.mxu0 %v649
        %713 = vmatpush.msra.mxu0 %v648
        %714 = vmatpush.msra.mxu0 %v647
        %715 = vmatpush.msra.mxu0 %v646
        %716 = vmatpush.msra.mxu0 %v645
        %717 = vmatpush.msra.mxu0 %v644
        %718 = vmatpush.msra.mxu0 %v643
        %719 = vmatpush.msra.mxu0 %v642
        %720 = vmatpush.msra.mxu0 %v641
        %721 = vmatpush.msra.mxu0 %v640
        %722 = vmatpush.msra.mxu0 %v639
        %723 = vmatpush.msra.mxu0 %v638
        %724 = vmatpush.msra.mxu0 %v637
        %725 = vmatmul.f32.gmra.mxu0 %v618
        %v726 = vpop.f32.mrf.mxu0
        %v727 = vadd.f32 %v707, %v726
        %728 = vdwg.mxu0
        %729 = vmatpush.msra.mxu0 %v668
        %730 = vmatpush.msra.mxu0 %v667
        %731 = vmatpush.msra.mxu0 %v666
        %732 = vmatpush.msra.mxu0 %v665
        %733 = vmatpush.msra.mxu0 %v664
        %734 = vmatpush.msra.mxu0 %v663
        %735 = vmatpush.msra.mxu0 %v662
        %736 = vmatpush.msra.mxu0 %v661
        %737 = vmatpush.msra.mxu0 %v660
        %738 = vmatpush.msra.mxu0 %v659
        %739 = vmatpush.msra.mxu0 %v658
        %740 = vmatpush.msra.mxu0 %v657
        %741 = vmatpush.msra.mxu0 %v656
        %742 = vmatpush.msra.mxu0 %v655
        %743 = vmatpush.msra.mxu0 %v654
        %744 = vmatpush.msra.mxu0 %v653
        %745 = vmatmul.f32.gmra.mxu0 %v619
        %v746 = vpop.f32.mrf.mxu0
        %v747 = vadd.f32 %v727, %v746
        %748 = vdwg.mxu0
        %749 = vmatpush.msra.mxu0 %v684
        %750 = vmatpush.msra.mxu0 %v683
        %751 = vmatpush.msra.mxu0 %v682
        %752 = vmatpush.msra.mxu0 %v681
        %753 = vmatpush.msra.mxu0 %v680
        %754 = vmatpush.msra.mxu0 %v679
        %755 = vmatpush.msra.mxu0 %v678
        %756 = vmatpush.msra.mxu0 %v677
        %757 = vmatpush.msra.mxu0 %v676
        %758 = vmatpush.msra.mxu0 %v675
        %759 = vmatpush.msra.mxu0 %v674
        %760 = vmatpush.msra.mxu0 %v673
        %761 = vmatpush.msra.mxu0 %v672
        %762 = vmatpush.msra.mxu0 %v671
        %763 = vmatpush.msra.mxu0 %v670
        %764 = vmatpush.msra.mxu0 %v669
        %765 = vmatmul.f32.gmra.mxu0 %v620
        %v766 = vpop.f32.mrf.mxu0
        %v767 = vadd.f32 %v747, %v766
        %768 = vdwg.mxu0
        %769 = vst [vmem:[%s289] sm:$0xff] %v767
        %s770 = sand.u32 %s142, 1
        %s771 = scalar_lea.sflag [#allocation4], %s770
        %s772 = sand.u32 %s142, 1
        %s773 = smul.addr %s772, 8
        %s774 = scalar_lea.vmem [#allocation10], %s773
        // Predicated region
        $region57: #{mlp_block.1} parent=39 // pred_check
          %p775 = pneg %p152
        $region58: #{mlp_block.1} parent=39 // pred_check_branch
          %777 = sbr.rel (%p775) target = $region60
        $region59: #{mlp_block.1} parent=39 // pred_region
          %779 = vsyncadd %s771, 0
          %s780 = smul.addr %s24, 8
          %s781 = scalar_lea.hbm %s5, %s780
          %s783 = sshll.u32 %s774, 4
          %s784 = int_to_ptr.vmem [resolvable:$true] %s783
          %s785 = sshll.u32 %s781, 4
          %s786 = int_to_ptr.hbm [resolvable:$true] %s785
          %788 = dma.vmem_to_hbm [thread:$0]  %s784, 128, %s786, %s771
        $region60: #{mlp_block.1} parent=39 // pred_fallthru
          _
      $region40: #{mlp_block.1} parent=5 // pred_fallthru
        _
      %p789 = scmp.le.s32.totalorder 2, %s19
      // Predicated region
      $region61: #{mlp_block.1} parent=5 // pred_check
        %p790 = pneg %p789
      $region62: #{mlp_block.1} parent=5 // pred_check_branch
        %792 = sbr.rel (%p790) target = $region64
      $region63: #{mlp_block.1} parent=5 // pred_region
        %s793 = ssub.s32 %s19, 2
        // Predicated region
        $region65: #{mlp_block.1} parent=63 // pred_check
          %p794 = pneg %p158
        $region66: #{mlp_block.1} parent=63 // pred_check_branch
          %796 = sbr.rel (%p794) target = $region68
        $region67: #{mlp_block.1} parent=63 // pred_region
          %s797 = sand.u32 %s143, 1
          %s798 = scalar_lea.sflag [#allocation4], %s797
          %s799 = sand.u32 %s143, 1
          %s800 = smul.addr %s799, 8
          %s801 = scalar_lea.vmem [#allocation10], %s800
          %803 = dma.done %s798, 128
        $region68: #{mlp_block.1} parent=63 // pred_fallthru
          _
      $region64: #{mlp_block.1} parent=5 // pred_fallthru
        _
    $region6: #{mlp_block.1} parent=1 // loop_footer
      %s23 = sadd.s32 1, %s19
    $region7: #{mlp_block.1} parent=1 // loop_footer_branch
      %18 = sbr.rel target = $region3
    $region8: #{mlp_block.1} parent=1 // loop_exit
      _
    %804 = vsyncpa [#allocation3], 1
    %s805 = scalar_lea.sflag [#allocation3], 1
    %806 = vsyncpa %s805, 1
    %807 = vsyncpa [#allocation6], 1
    %808 = vsyncpa [#allocation9], 1
    %809 = vsyncpa [#allocation4], 1
    %s810 = scalar_lea.sflag [#allocation4], 1
    %811 = vsyncpa %s810, 1

</llo_original>
